<compile_context>
chip_gen: v7x
topology: tpu7x:2x2x1
jax: 0.10.0
libtpu: 0.0.40
codegen_flags: <defaults>
</compile_context>

<pallas_src>
import math

import jax
import jax.numpy as jnp
from jax import lax
from jax.experimental import pallas as pl
from jax.experimental.pallas import tpu as pltpu


_NSTATS = 5                    # [sum_r, sum_e, sum_r^2, sum_e^2, sum_e*r]
_MAX_FOLD = 64                 # max unrolled W-wide slices per chunk
_TARGET_BLOCK_BYTES = 2 << 20  # per-input block byte target (pre-caps)


def _round_up(x, m):
    return ((x + m - 1) // m) * m


def _cdiv(a, b):
    return (a + b - 1) // b


def _plan(B, L, S, itemsize):
    """Pick fold width, row block, chunk length and (optional) time split."""
    W = 128 * S // math.gcd(128, S)          # source-aligned, lane-dense fold width
    lane_vregs = W // 128
    # Rows per block: keep the 5 f32 accumulators of (b_block, W) in vregs.
    row_cap = max(8, 8 * (4 // lane_vregs))
    if B <= row_cap:
        b_block, n_rb = B, 1                 # full dim -> no (8,128) issue, no row pad
    else:
        b_block, n_rb = row_cap, _cdiv(B, row_cap)
    # Chunk lanes: as large as the byte target / unroll cap allow, multiple of W.
    target_c = max(W, _TARGET_BLOCK_BYTES // max(1, b_block * itemsize))
    nfold = max(1, min(_MAX_FOLD, target_c // W))
    chunk = min(nfold * W, _round_up(L, W))  # never (much) longer than the data
    nfold = chunk // W
    n_chunks = _cdiv(L, chunk)
    # With a single row block, split the chunk range 2-way (feeds both v7x TCs).
    t_split = 2 if (n_rb == 1 and n_chunks >= 2) else 1
    cps = _cdiv(n_chunks, t_split)           # chunks per split
    # Mask whenever the last chunk is partial or a split overshoots n_chunks.
    mask_needed = (L % chunk != 0) or (t_split * cps != n_chunks)
    return W, b_block, n_rb, chunk, nfold, n_chunks, t_split, cps, mask_needed


def _make_stats_kernel(W, nfold, chunk, L, cps, mask_needed):
    """Kernel: accumulate 5 source-aligned partial-sum slabs per row block."""

    def kernel(est_ref, ref_ref, out_ref):
        t = pl.program_id(2)

        @pl.when(t == 0)
        def _init():
            out_ref[...] = jnp.zeros_like(out_ref)

        if mask_needed:
            g = pl.program_id(0) * cps + t            # global chunk index
            rem = L - g * chunk                        # valid lanes left in chunk
            lane = lax.broadcasted_iota(jnp.int32, (1, W), 1)

        acc_r = acc_e = acc_rr = acc_ee = acc_re = None
        for k in range(nfold):                         # static, vreg-aligned slices
            rk = ref_ref[:, k * W:(k + 1) * W].astype(jnp.float32)
            ek = est_ref[:, k * W:(k + 1) * W].astype(jnp.float32)
            if mask_needed:
                valid = lane < (rem - k * W)
                rk = jnp.where(valid, rk, 0.0)
                ek = jnp.where(valid, ek, 0.0)
            if k == 0:
                acc_r, acc_e = rk, ek
                acc_rr, acc_ee, acc_re = rk * rk, ek * ek, ek * rk
            else:
                acc_r = acc_r + rk
                acc_e = acc_e + ek
                acc_rr = acc_rr + rk * rk
                acc_ee = acc_ee + ek * ek
                acc_re = acc_re + ek * rk

        # One RMW per stat per chunk into the resident lane-dense out block.
        out_ref[:, 0 * W:1 * W] += acc_r
        out_ref[:, 1 * W:2 * W] += acc_e
        out_ref[:, 2 * W:3 * W] += acc_rr
        out_ref[:, 3 * W:4 * W] += acc_ee
        out_ref[:, 4 * W:5 * W] += acc_re

    return kernel


def sisdr_loss(estimates, references, *, scaling=True, return_scaling=False,
               reduction="mean", zero_mean=True, clip_min=None):
    """JAX/Pallas equivalent of SISDRLoss.forward (defaults match the module)."""
    eps = 1e-8
    _shape = references.shape
    T, S = _shape[-2], _shape[-1]
    B = 1
    for d in _shape[:-2]:
        B *= d
    B = max(B, 1)
    L = T * S

    # Native contiguous layout: (..., T, S) -> (B, T*S) is a free reshape.
    refs = references.reshape(B, L)
    ests = estimates.reshape(B, L)

    itemsize = jnp.dtype(refs.dtype).itemsize
    (W, b_block, n_rb, chunk, nfold, n_chunks,
     t_split, cps, mask_needed) = _plan(B, L, S, itemsize)

    def in_index(s, r, t):
        # Clamp so any overshoot step of the t-split re-reads the last
        # in-bounds chunk; the kernel's lane mask zeroes its contribution.
        return (r, jnp.minimum(s * cps + t, n_chunks - 1))

    kernel = _make_stats_kernel(W, nfold, chunk, L, cps, mask_needed)

    stats = pl.pallas_call(
        kernel,
        out_shape=jax.ShapeDtypeStruct((t_split, B, _NSTATS * W), jnp.float32),
        grid=(t_split, n_rb, cps),
        in_specs=[
            pl.BlockSpec((b_block, chunk), in_index),   # estimates
            pl.BlockSpec((b_block, chunk), in_index),   # references
        ],
        out_specs=pl.BlockSpec((None, b_block, _NSTATS * W),
                               lambda s, r, t: (s, r, 0)),
        compiler_params=pltpu.CompilerParams(
            dimension_semantics=("parallel", "parallel", "arbitrary"),
            vmem_limit_bytes=32 * 1024 * 1024,
        ),
    )(ests, refs)

    # (t_split, B, 5W): sum the time splits, then finish the per-source reduce
    # (lane w holds source w % S) -> (B, 5, S) raw sums.
    sums = stats.sum(axis=0).reshape(B, _NSTATS, W // S, S).sum(axis=2)
    s_r, s_e, s_rr, s_ee, s_re = (sums[:, i, :] for i in range(_NSTATS))

    tN = jnp.float32(T)
    if zero_mean:
        # single-pass zero-mean correction (assumes roughly centered audio)
        rr = s_rr - s_r * s_r / tN            # sum((r - mean_r)^2)
        ee = s_ee - s_e * s_e / tN            # sum((e - mean_e)^2)
        re = s_re - s_r * s_e / tN            # sum((e - mean_e)(r - mean_r))
    else:
        rr, ee, re = s_rr, s_ee, s_re

    references_projection = rr + eps
    references_on_estimates = re + eps
    if scaling:
        scale = references_on_estimates / references_projection
    else:
        scale = jnp.ones_like(rr)

    signal = scale * scale * rr                             # sum(e_true^2)
    noise = ee - 2.0 * scale * re + scale * scale * rr      # sum((e - e_true)^2)
    sdr = -10.0 * jnp.log10(signal / noise + eps)           # (B, S)

    if clip_min is not None:
        sdr = jnp.maximum(sdr, clip_min)
    if reduction == "mean":
        sdr = jnp.mean(sdr)
    elif reduction == "sum":
        sdr = jnp.sum(sdr)
    if return_scaling:
        return scale.reshape(B, 1, S) if scaling else jnp.float32(1.0)
    return sdr


def _sisdr_loss_ref(estimates, references, *, scaling=True, reduction="mean",
                    zero_mean=True, clip_min=None):
    """Pure-JAX reference (direct transcription of the PyTorch forward)."""
    eps = 1e-8
    _shape = references.shape
    r = references.reshape(-1, _shape[-2], _shape[-1]).astype(jnp.float32)
    e = estimates.reshape(-1, _shape[-2], _shape[-1]).astype(jnp.float32)
    if zero_mean:
        r = r - r.mean(axis=1, keepdims=True)
        e = e - e.mean(axis=1, keepdims=True)
    refs_proj = (r ** 2).sum(axis=-2) + eps
    refs_on_est = (e * r).sum(axis=-2) + eps
    scale = (refs_on_est / refs_proj)[:, None, :] if scaling else 1.0
    e_true = scale * r
    e_res = e - e_true
    signal = (e_true ** 2).sum(axis=1)
    noise = (e_res ** 2).sum(axis=1)
    sdr = -10.0 * jnp.log10(signal / noise + eps)
    if clip_min is not None:
        sdr = jnp.maximum(sdr, clip_min)
    if reduction == "mean":
        sdr = sdr.mean()
    elif reduction == "sum":
        sdr = sdr.sum()
    return sdr


if __name__ == "__main__":
    key = jax.random.PRNGKey(0)
    k1, k2, k3, k4 = jax.random.split(key, 4)

    def make_pair(k_ref, k_noise, shape):
        refs = jax.random.normal(k_ref, shape, dtype=jnp.float32)
        ests = 0.7 * refs + 0.3 * jax.random.normal(k_noise, shape, jnp.float32)
        return ests, refs

    # 1) Default config; T*S not a multiple of 128 -> exercises the tail mask.
    ests, refs = make_pair(k1, k2, (2, 3, 200, 4))
    out = jax.block_until_ready(sisdr_loss(ests, refs))
    exp = _sisdr_loss_ref(ests, refs)
    assert jnp.allclose(out, exp, rtol=1e-4, atol=1e-4), (out, exp)

    # return_scaling path (monitoring value).
    scale_out = jax.block_until_ready(sisdr_loss(ests, refs, return_scaling=True))
    r0 = refs.reshape(-1, 200, 4)
    e0 = ests.reshape(-1, 200, 4)
    r0 = r0 - r0.mean(axis=1, keepdims=True)
    e0 = e0 - e0.mean(axis=1, keepdims=True)
    exp_scale = (((e0 * r0).sum(1) + 1e-8) / ((r0 ** 2).sum(1) + 1e-8))[:, None, :]
    assert jnp.allclose(scale_out, exp_scale, rtol=1e-4, atol=1e-4)

    # 2) SNR mode, no zero-mean, sum reduction, clipped; odd source count
    #    (S=3 -> fold width lcm(128,3)=384).
    ests2, refs2 = make_pair(k3, k4, (2, 2, 150, 3))
    out2 = jax.block_until_ready(
        sisdr_loss(ests2, refs2, scaling=False, zero_mean=False,
                   reduction="sum", clip_min=0.0))
    exp2 = _sisdr_loss_ref(ests2, refs2, scaling=False, zero_mean=False,
                           reduction="sum", clip_min=0.0)
    assert jnp.allclose(out2, exp2, rtol=1e-4, atol=1e-4), (out2, exp2)

    # 3) Small batch x long signal: exercises multi-chunk streaming, the
    #    2-way t-split (both v7x cores) and the partial tail chunk.
    ests3, refs3 = make_pair(k2, k3, (1, 2, 5000, 2))
    out3 = jax.block_until_ready(sisdr_loss(ests3, refs3))
    exp3 = _sisdr_loss_ref(ests3, refs3)
    assert jnp.allclose(out3, exp3, rtol=1e-4, atol=1e-4), (out3, exp3)

    print("KERNEL_OK")
</pallas_src>

<mosaic_0001>
module attributes {stable_mosaic.version = 11 : i64} {
  func.func @kernel(%arg0: i32, %arg1: i32, %arg2: i32, %arg3: memref<6x896xf32, #tpu.memory_space<vmem>>, %arg4: memref<6x896xf32, #tpu.memory_space<vmem>>, %arg5: memref<1x6x640xf32, #tpu.memory_space<vmem>>) attributes {dimension_semantics = [#tpu.dimension_semantics<parallel>, #tpu.dimension_semantics<parallel>, #tpu.dimension_semantics<arbitrary>], iteration_bounds = array<i64: 1, 1, 1>, scalar_prefetch = 0 : i64, scratch_operands = 0 : i64, tpu.core_type = #tpu.core_type<tc>, window_params = [{transform_indices = @transform_0, window_bounds = array<i64: 6, 896>}, {transform_indices = @transform_1, window_bounds = array<i64: 6, 896>}, {transform_indices = @transform_2, window_bounds = array<i64: 1, 6, 640>}]} {
    %c0_i32 = arith.constant 0 : i32
    %0 = arith.cmpi eq, %arg2, %c0_i32 : i32
    %1 = arith.extui %0 : i1 to i32
    %c0_i32_0 = arith.constant 0 : i32
    %2 = arith.cmpi ne, %1, %c0_i32_0 : i32
    scf.if %2 {
      %cst_66 = arith.constant 0.000000e+00 : f32
      %180 = vector.broadcast %cst_66 : f32 to vector<6x640xf32>
      %c0_67 = arith.constant 0 : index
      %c0_68 = arith.constant 0 : index
      %c0_69 = arith.constant 0 : index
      %181 = vector.load %arg5[%c0_67, %c0_68, %c0_69] : memref<1x6x640xf32, #tpu.memory_space<vmem>>, vector<1x6x640xf32>
      %182 = vector.shape_cast %181 : vector<1x6x640xf32> to vector<6x640xf32>
      %183 = vector.shape_cast %180 : vector<6x640xf32> to vector<1x6x640xf32>
      tpu.vector_store %arg5[%c0_67, %c0_68, %c0_69], %183 {strides = array<i32>} : memref<1x6x640xf32, #tpu.memory_space<vmem>>, vector<1x6x640xf32>,
    } else {
    }
    %c1_i32 = arith.constant 1 : i32
    %3 = arith.muli %arg0, %c1_i32 : i32
    %4 = arith.addi %3, %arg2 : i32
    %c896_i32 = arith.constant 896 : i32
    %5 = arith.muli %4, %c896_i32 : i32
    %c800_i32 = arith.constant 800 : i32
    %6 = arith.subi %c800_i32, %5 : i32
    %7 = tpu.iota {dimensions = array<i32: 1>} : vector<1x128xi32>
    %c0 = arith.constant 0 : index
    %c0_1 = arith.constant 0 : index
    %8 = vector.load %arg4[%c0, %c0_1] : memref<6x896xf32, #tpu.memory_space<vmem>>, vector<6x128xf32>
    %c0_2 = arith.constant 0 : index
    %c0_3 = arith.constant 0 : index
    %9 = vector.load %arg3[%c0_2, %c0_3] : memref<6x896xf32, #tpu.memory_space<vmem>>, vector<6x128xf32>
    %c0_i32_4 = arith.constant 0 : i32
    %10 = arith.subi %6, %c0_i32_4 : i32
    %11 = vector.broadcast %10 : i32 to vector<1x128xi32>
    %12 = arith.cmpi slt, %7, %11 : vector<1x128xi32>
    %cst = arith.constant 0.000000e+00 : f32
    %13 = vector.shape_cast %12 : vector<1x128xi1> to vector<1x128xi1>
    %14 = vector.broadcast %13 : vector<1x128xi1> to vector<6x128xi1>
    %15 = vector.broadcast %cst : f32 to vector<6x128xf32>
    %16 = arith.select %14, %8, %15 : vector<6x128xi1>, vector<6x128xf32>
    %cst_5 = arith.constant 0.000000e+00 : f32
    %17 = vector.shape_cast %12 : vector<1x128xi1> to vector<1x128xi1>
    %18 = vector.broadcast %17 : vector<1x128xi1> to vector<6x128xi1>
    %19 = vector.broadcast %cst_5 : f32 to vector<6x128xf32>
    %20 = arith.select %18, %9, %19 : vector<6x128xi1>, vector<6x128xf32>
    %21 = arith.mulf %16, %16 : vector<6x128xf32>
    %22 = arith.mulf %20, %20 : vector<6x128xf32>
    %23 = arith.mulf %20, %16 : vector<6x128xf32>
    %c0_6 = arith.constant 0 : index
    %c128 = arith.constant 128 : index
    %24 = vector.load %arg4[%c0_6, %c128] : memref<6x896xf32, #tpu.memory_space<vmem>>, vector<6x128xf32>
    %c0_7 = arith.constant 0 : index
    %c128_8 = arith.constant 128 : index
    %25 = vector.load %arg3[%c0_7, %c128_8] : memref<6x896xf32, #tpu.memory_space<vmem>>, vector<6x128xf32>
    %c128_i32 = arith.constant 128 : i32
    %26 = arith.subi %6, %c128_i32 : i32
    %27 = vector.broadcast %26 : i32 to vector<1x128xi32>
    %28 = arith.cmpi slt, %7, %27 : vector<1x128xi32>
    %cst_9 = arith.constant 0.000000e+00 : f32
    %29 = vector.shape_cast %28 : vector<1x128xi1> to vector<1x128xi1>
    %30 = vector.broadcast %29 : vector<1x128xi1> to vector<6x128xi1>
    %31 = vector.broadcast %cst_9 : f32 to vector<6x128xf32>
    %32 = arith.select %30, %24, %31 : vector<6x128xi1>, vector<6x128xf32>
    %cst_10 = arith.constant 0.000000e+00 : f32
    %33 = vector.shape_cast %28 : vector<1x128xi1> to vector<1x128xi1>
    %34 = vector.broadcast %33 : vector<1x128xi1> to vector<6x128xi1>
    %35 = vector.broadcast %cst_10 : f32 to vector<6x128xf32>
    %36 = arith.select %34, %25, %35 : vector<6x128xi1>, vector<6x128xf32>
    %37 = arith.addf %16, %32 : vector<6x128xf32>
    %38 = arith.addf %20, %36 : vector<6x128xf32>
    %39 = arith.mulf %32, %32 : vector<6x128xf32>
    %40 = arith.addf %21, %39 : vector<6x128xf32>
    %41 = arith.mulf %36, %36 : vector<6x128xf32>
    %42 = arith.addf %22, %41 : vector<6x128xf32>
    %43 = arith.mulf %36, %32 : vector<6x128xf32>
    %44 = arith.addf %23, %43 : vector<6x128xf32>
    %c0_11 = arith.constant 0 : index
    %c256 = arith.constant 256 : index
    %45 = vector.load %arg4[%c0_11, %c256] : memref<6x896xf32, #tpu.memory_space<vmem>>, vector<6x128xf32>
    %c0_12 = arith.constant 0 : index
    %c256_13 = arith.constant 256 : index
    %46 = vector.load %arg3[%c0_12, %c256_13] : memref<6x896xf32, #tpu.memory_space<vmem>>, vector<6x128xf32>
    %c256_i32 = arith.constant 256 : i32
    %47 = arith.subi %6, %c256_i32 : i32
    %48 = vector.broadcast %47 : i32 to vector<1x128xi32>
    %49 = arith.cmpi slt, %7, %48 : vector<1x128xi32>
    %cst_14 = arith.constant 0.000000e+00 : f32
    %50 = vector.shape_cast %49 : vector<1x128xi1> to vector<1x128xi1>
    %51 = vector.broadcast %50 : vector<1x128xi1> to vector<6x128xi1>
    %52 = vector.broadcast %cst_14 : f32 to vector<6x128xf32>
    %53 = arith.select %51, %45, %52 : vector<6x128xi1>, vector<6x128xf32>
    %cst_15 = arith.constant 0.000000e+00 : f32
    %54 = vector.shape_cast %49 : vector<1x128xi1> to vector<1x128xi1>
    %55 = vector.broadcast %54 : vector<1x128xi1> to vector<6x128xi1>
    %56 = vector.broadcast %cst_15 : f32 to vector<6x128xf32>
    %57 = arith.select %55, %46, %56 : vector<6x128xi1>, vector<6x128xf32>
    %58 = arith.addf %37, %53 : vector<6x128xf32>
    %59 = arith.addf %38, %57 : vector<6x128xf32>
    %60 = arith.mulf %53, %53 : vector<6x128xf32>
    %61 = arith.addf %40, %60 : vector<6x128xf32>
    %62 = arith.mulf %57, %57 : vector<6x128xf32>
    %63 = arith.addf %42, %62 : vector<6x128xf32>
    %64 = arith.mulf %57, %53 : vector<6x128xf32>
    %65 = arith.addf %44, %64 : vector<6x128xf32>
    %c0_16 = arith.constant 0 : index
    %c384 = arith.constant 384 : index
    %66 = vector.load %arg4[%c0_16, %c384] : memref<6x896xf32, #tpu.memory_space<vmem>>, vector<6x128xf32>
    %c0_17 = arith.constant 0 : index
    %c384_18 = arith.constant 384 : index
    %67 = vector.load %arg3[%c0_17, %c384_18] : memref<6x896xf32, #tpu.memory_space<vmem>>, vector<6x128xf32>
    %c384_i32 = arith.constant 384 : i32
    %68 = arith.subi %6, %c384_i32 : i32
    %69 = vector.broadcast %68 : i32 to vector<1x128xi32>
    %70 = arith.cmpi slt, %7, %69 : vector<1x128xi32>
    %cst_19 = arith.constant 0.000000e+00 : f32
    %71 = vector.shape_cast %70 : vector<1x128xi1> to vector<1x128xi1>
    %72 = vector.broadcast %71 : vector<1x128xi1> to vector<6x128xi1>
    %73 = vector.broadcast %cst_19 : f32 to vector<6x128xf32>
    %74 = arith.select %72, %66, %73 : vector<6x128xi1>, vector<6x128xf32>
    %cst_20 = arith.constant 0.000000e+00 : f32
    %75 = vector.shape_cast %70 : vector<1x128xi1> to vector<1x128xi1>
    %76 = vector.broadcast %75 : vector<1x128xi1> to vector<6x128xi1>
    %77 = vector.broadcast %cst_20 : f32 to vector<6x128xf32>
    %78 = arith.select %76, %67, %77 : vector<6x128xi1>, vector<6x128xf32>
    %79 = arith.addf %58, %74 : vector<6x128xf32>
    %80 = arith.addf %59, %78 : vector<6x128xf32>
    %81 = arith.mulf %74, %74 : vector<6x128xf32>
    %82 = arith.addf %61, %81 : vector<6x128xf32>
    %83 = arith.mulf %78, %78 : vector<6x128xf32>
    %84 = arith.addf %63, %83 : vector<6x128xf32>
    %85 = arith.mulf %78, %74 : vector<6x128xf32>
    %86 = arith.addf %65, %85 : vector<6x128xf32>
    %c0_21 = arith.constant 0 : index
    %c512 = arith.constant 512 : index
    %87 = vector.load %arg4[%c0_21, %c512] : memref<6x896xf32, #tpu.memory_space<vmem>>, vector<6x128xf32>
    %c0_22 = arith.constant 0 : index
    %c512_23 = arith.constant 512 : index
    %88 = vector.load %arg3[%c0_22, %c512_23] : memref<6x896xf32, #tpu.memory_space<vmem>>, vector<6x128xf32>
    %c512_i32 = arith.constant 512 : i32
    %89 = arith.subi %6, %c512_i32 : i32
    %90 = vector.broadcast %89 : i32 to vector<1x128xi32>
    %91 = arith.cmpi slt, %7, %90 : vector<1x128xi32>
    %cst_24 = arith.constant 0.000000e+00 : f32
    %92 = vector.shape_cast %91 : vector<1x128xi1> to vector<1x128xi1>
    %93 = vector.broadcast %92 : vector<1x128xi1> to vector<6x128xi1>
    %94 = vector.broadcast %cst_24 : f32 to vector<6x128xf32>
    %95 = arith.select %93, %87, %94 : vector<6x128xi1>, vector<6x128xf32>
    %cst_25 = arith.constant 0.000000e+00 : f32
    %96 = vector.shape_cast %91 : vector<1x128xi1> to vector<1x128xi1>
    %97 = vector.broadcast %96 : vector<1x128xi1> to vector<6x128xi1>
    %98 = vector.broadcast %cst_25 : f32 to vector<6x128xf32>
    %99 = arith.select %97, %88, %98 : vector<6x128xi1>, vector<6x128xf32>
    %100 = arith.addf %79, %95 : vector<6x128xf32>
    %101 = arith.addf %80, %99 : vector<6x128xf32>
    %102 = arith.mulf %95, %95 : vector<6x128xf32>
    %103 = arith.addf %82, %102 : vector<6x128xf32>
    %104 = arith.mulf %99, %99 : vector<6x128xf32>
    %105 = arith.addf %84, %104 : vector<6x128xf32>
    %106 = arith.mulf %99, %95 : vector<6x128xf32>
    %107 = arith.addf %86, %106 : vector<6x128xf32>
    %c0_26 = arith.constant 0 : index
    %c640 = arith.constant 640 : index
    %108 = vector.load %arg4[%c0_26, %c640] : memref<6x896xf32, #tpu.memory_space<vmem>>, vector<6x128xf32>
    %c0_27 = arith.constant 0 : index
    %c640_28 = arith.constant 640 : index
    %109 = vector.load %arg3[%c0_27, %c640_28] : memref<6x896xf32, #tpu.memory_space<vmem>>, vector<6x128xf32>
    %c640_i32 = arith.constant 640 : i32
    %110 = arith.subi %6, %c640_i32 : i32
    %111 = vector.broadcast %110 : i32 to vector<1x128xi32>
    %112 = arith.cmpi slt, %7, %111 : vector<1x128xi32>
    %cst_29 = arith.constant 0.000000e+00 : f32
    %113 = vector.shape_cast %112 : vector<1x128xi1> to vector<1x128xi1>
    %114 = vector.broadcast %113 : vector<1x128xi1> to vector<6x128xi1>
    %115 = vector.broadcast %cst_29 : f32 to vector<6x128xf32>
    %116 = arith.select %114, %108, %115 : vector<6x128xi1>, vector<6x128xf32>
    %cst_30 = arith.constant 0.000000e+00 : f32
    %117 = vector.shape_cast %112 : vector<1x128xi1> to vector<1x128xi1>
    %118 = vector.broadcast %117 : vector<1x128xi1> to vector<6x128xi1>
    %119 = vector.broadcast %cst_30 : f32 to vector<6x128xf32>
    %120 = arith.select %118, %109, %119 : vector<6x128xi1>, vector<6x128xf32>
    %121 = arith.addf %100, %116 : vector<6x128xf32>
    %122 = arith.addf %101, %120 : vector<6x128xf32>
    %123 = arith.mulf %116, %116 : vector<6x128xf32>
    %124 = arith.addf %103, %123 : vector<6x128xf32>
    %125 = arith.mulf %120, %120 : vector<6x128xf32>
    %126 = arith.addf %105, %125 : vector<6x128xf32>
    %127 = arith.mulf %120, %116 : vector<6x128xf32>
    %128 = arith.addf %107, %127 : vector<6x128xf32>
    %c0_31 = arith.constant 0 : index
    %c768 = arith.constant 768 : index
    %129 = vector.load %arg4[%c0_31, %c768] : memref<6x896xf32, #tpu.memory_space<vmem>>, vector<6x128xf32>
    %c0_32 = arith.constant 0 : index
    %c768_33 = arith.constant 768 : index
    %130 = vector.load %arg3[%c0_32, %c768_33] : memref<6x896xf32, #tpu.memory_space<vmem>>, vector<6x128xf32>
    %c768_i32 = arith.constant 768 : i32
    %131 = arith.subi %6, %c768_i32 : i32
    %132 = vector.broadcast %131 : i32 to vector<1x128xi32>
    %133 = arith.cmpi slt, %7, %132 : vector<1x128xi32>
    %cst_34 = arith.constant 0.000000e+00 : f32
    %134 = vector.shape_cast %133 : vector<1x128xi1> to vector<1x128xi1>
    %135 = vector.broadcast %134 : vector<1x128xi1> to vector<6x128xi1>
    %136 = vector.broadcast %cst_34 : f32 to vector<6x128xf32>
    %137 = arith.select %135, %129, %136 : vector<6x128xi1>, vector<6x128xf32>
    %cst_35 = arith.constant 0.000000e+00 : f32
    %138 = vector.shape_cast %133 : vector<1x128xi1> to vector<1x128xi1>
    %139 = vector.broadcast %138 : vector<1x128xi1> to vector<6x128xi1>
    %140 = vector.broadcast %cst_35 : f32 to vector<6x128xf32>
    %141 = arith.select %139, %130, %140 : vector<6x128xi1>, vector<6x128xf32>
    %142 = arith.addf %121, %137 : vector<6x128xf32>
    %143 = arith.addf %122, %141 : vector<6x128xf32>
    %144 = arith.mulf %137, %137 : vector<6x128xf32>
    %145 = arith.addf %124, %144 : vector<6x128xf32>
    %146 = arith.mulf %141, %141 : vector<6x128xf32>
    %147 = arith.addf %126, %146 : vector<6x128xf32>
    %148 = arith.mulf %141, %137 : vector<6x128xf32>
    %149 = arith.addf %128, %148 : vector<6x128xf32>
    %c0_36 = arith.constant 0 : index
    %c0_37 = arith.constant 0 : index
    %c0_38 = arith.constant 0 : index
    %150 = vector.load %arg5[%c0_36, %c0_37, %c0_38] : memref<1x6x640xf32, #tpu.memory_space<vmem>>, vector<1x6x128xf32>
    %151 = vector.shape_cast %150 : vector<1x6x128xf32> to vector<6x128xf32>
    %152 = arith.addf %151, %142 : vector<6x128xf32>
    %c0_39 = arith.constant 0 : index
    %c0_40 = arith.constant 0 : index
    %c0_41 = arith.constant 0 : index
    %153 = vector.load %arg5[%c0_39, %c0_40, %c0_41] : memref<1x6x640xf32, #tpu.memory_space<vmem>>, vector<1x6x128xf32>
    %154 = vector.shape_cast %153 : vector<1x6x128xf32> to vector<6x128xf32>
    %155 = vector.shape_cast %152 : vector<6x128xf32> to vector<1x6x128xf32>
    tpu.vector_store %arg5[%c0_39, %c0_40, %c0_41], %155 {strides = array<i32>} : memref<1x6x640xf32, #tpu.memory_space<vmem>>, vector<1x6x128xf32>,
    %c0_42 = arith.constant 0 : index
    %c0_43 = arith.constant 0 : index
    %c128_44 = arith.constant 128 : index
    %156 = vector.load %arg5[%c0_42, %c0_43, %c128_44] : memref<1x6x640xf32, #tpu.memory_space<vmem>>, vector<1x6x128xf32>
    %157 = vector.shape_cast %156 : vector<1x6x128xf32> to vector<6x128xf32>
    %158 = arith.addf %157, %143 : vector<6x128xf32>
    %c0_45 = arith.constant 0 : index
    %c0_46 = arith.constant 0 : index
    %c128_47 = arith.constant 128 : index
    %159 = vector.load %arg5[%c0_45, %c0_46, %c128_47] : memref<1x6x640xf32, #tpu.memory_space<vmem>>, vector<1x6x128xf32>
    %160 = vector.shape_cast %159 : vector<1x6x128xf32> to vector<6x128xf32>
    %161 = vector.shape_cast %158 : vector<6x128xf32> to vector<1x6x128xf32>
    tpu.vector_store %arg5[%c0_45, %c0_46, %c128_47], %161 {strides = array<i32>} : memref<1x6x640xf32, #tpu.memory_space<vmem>>, vector<1x6x128xf32>,
    %c0_48 = arith.constant 0 : index
    %c0_49 = arith.constant 0 : index
    %c256_50 = arith.constant 256 : index
    %162 = vector.load %arg5[%c0_48, %c0_49, %c256_50] : memref<1x6x640xf32, #tpu.memory_space<vmem>>, vector<1x6x128xf32>
    %163 = vector.shape_cast %162 : vector<1x6x128xf32> to vector<6x128xf32>
    %164 = arith.addf %163, %145 : vector<6x128xf32>
    %c0_51 = arith.constant 0 : index
    %c0_52 = arith.constant 0 : index
    %c256_53 = arith.constant 256 : index
    %165 = vector.load %arg5[%c0_51, %c0_52, %c256_53] : memref<1x6x640xf32, #tpu.memory_space<vmem>>, vector<1x6x128xf32>
    %166 = vector.shape_cast %165 : vector<1x6x128xf32> to vector<6x128xf32>
    %167 = vector.shape_cast %164 : vector<6x128xf32> to vector<1x6x128xf32>
    tpu.vector_store %arg5[%c0_51, %c0_52, %c256_53], %167 {strides = array<i32>} : memref<1x6x640xf32, #tpu.memory_space<vmem>>, vector<1x6x128xf32>,
    %c0_54 = arith.constant 0 : index
    %c0_55 = arith.constant 0 : index
    %c384_56 = arith.constant 384 : index
    %168 = vector.load %arg5[%c0_54, %c0_55, %c384_56] : memref<1x6x640xf32, #tpu.memory_space<vmem>>, vector<1x6x128xf32>
    %169 = vector.shape_cast %168 : vector<1x6x128xf32> to vector<6x128xf32>
    %170 = arith.addf %169, %147 : vector<6x128xf32>
    %c0_57 = arith.constant 0 : index
    %c0_58 = arith.constant 0 : index
    %c384_59 = arith.constant 384 : index
    %171 = vector.load %arg5[%c0_57, %c0_58, %c384_59] : memref<1x6x640xf32, #tpu.memory_space<vmem>>, vector<1x6x128xf32>
    %172 = vector.shape_cast %171 : vector<1x6x128xf32> to vector<6x128xf32>
    %173 = vector.shape_cast %170 : vector<6x128xf32> to vector<1x6x128xf32>
    tpu.vector_store %arg5[%c0_57, %c0_58, %c384_59], %173 {strides = array<i32>} : memref<1x6x640xf32, #tpu.memory_space<vmem>>, vector<1x6x128xf32>,
    %c0_60 = arith.constant 0 : index
    %c0_61 = arith.constant 0 : index
    %c512_62 = arith.constant 512 : index
    %174 = vector.load %arg5[%c0_60, %c0_61, %c512_62] : memref<1x6x640xf32, #tpu.memory_space<vmem>>, vector<1x6x128xf32>
    %175 = vector.shape_cast %174 : vector<1x6x128xf32> to vector<6x128xf32>
    %176 = arith.addf %175, %149 : vector<6x128xf32>
    %c0_63 = arith.constant 0 : index
    %c0_64 = arith.constant 0 : index
    %c512_65 = arith.constant 512 : index
    %177 = vector.load %arg5[%c0_63, %c0_64, %c512_65] : memref<1x6x640xf32, #tpu.memory_space<vmem>>, vector<1x6x128xf32>
    %178 = vector.shape_cast %177 : vector<1x6x128xf32> to vector<6x128xf32>
    %179 = vector.shape_cast %176 : vector<6x128xf32> to vector<1x6x128xf32>
    tpu.vector_store %arg5[%c0_63, %c0_64, %c512_65], %179 {strides = array<i32>} : memref<1x6x640xf32, #tpu.memory_space<vmem>>, vector<1x6x128xf32>,
    return
  }
  func.func @transform_0(%arg0: i32, %arg1: i32, %arg2: i32) -> (i32, i32) {
    %c1_i32 = arith.constant 1 : i32
    %0 = arith.muli %arg0, %c1_i32 : i32
    %1 = arith.addi %0, %arg2 : i32
    %c0_i32 = arith.constant 0 : i32
    %2 = arith.minsi %1, %c0_i32 : i32
    %c0_i32_0 = arith.constant 0 : i32
    return %arg1, %2 : i32, i32
  }
  func.func @transform_1(%arg0: i32, %arg1: i32, %arg2: i32) -> (i32, i32) {
    %c1_i32 = arith.constant 1 : i32
    %0 = arith.muli %arg0, %c1_i32 : i32
    %1 = arith.addi %0, %arg2 : i32
    %c0_i32 = arith.constant 0 : i32
    %2 = arith.minsi %1, %c0_i32 : i32
    %c0_i32_0 = arith.constant 0 : i32
    return %arg1, %2 : i32, i32
  }
  func.func @transform_2(%arg0: i32, %arg1: i32, %arg2: i32) -> (i32, i32, i32) {
    %c0_i32 = arith.constant 0 : i32
    %c0_i32_0 = arith.constant 0 : i32
    return %arg0, %arg1, %c0_i32 : i32, i32, i32
  }
}

</mosaic_0001>

<llo_original>
// kernel: tpu_custom_call.1
$region0: #{tpu_custom_call.1}
  #allocation0 [shape = 'u32[]', space=smem, size = 0x4, offset = 0x4, fixed_abs, tag = 'smem constant byte address 0x4 - core index']
  #allocation1 [shape = 'u32[144,128]{1,0:T(1,128)}', space=vmem, size = 0x12000, scoped, tag = 'internal scratch']
  %s0 = inlined_call_operand.hbm [shape: f32[6,800], index: 0, kind: input, shape index: {}]
  %s1 = inlined_call_operand.hbm [shape: f32[6,800], index: 1, kind: input, shape index: {}]
  %s2 = inlined_call_operand.vmem [shape: f32[1,6,640], index: 2, kind: output, shape index: {}]
  %s3 = sld [smem:[#allocation0]]
  $region30: #{tpu_custom_call.1} parent=0
    _
  %s5 = ssub.s32 1, %s3
  %s6 = scalar_select 0, %s5, %s3
  $region1: #{tpu_custom_call.1} parent=0
    #allocation2 [shape = 'u8[28672]{0}', space=vmem, size = 0x7000, scoped, tag = 'input window, operand 0, single buffered']
    #allocation3 [shape = 's32[1]{0}', space=sflag, size = 0x4, scoped, tag = 'scoped memory for tpu_custom_call.1']
    #allocation4 [shape = 'u8[28672]{0}', space=vmem, size = 0x7000, scoped, tag = 'input window, operand 1, single buffered']
    #allocation5 [shape = 's32[1]{0}', space=sflag, size = 0x4, scoped, tag = 'scoped memory for tpu_custom_call.1']
    %7 = vsyncpa [#allocation3], 0
    %8 = vsyncpa [#allocation5], 0
    // Predicated region
    $region2: #{tpu_custom_call.1} parent=1 // pred_check
      _
    $region3: #{tpu_custom_call.1} parent=1 // pred_check_branch
      %10 = sbr.rel (0) target = $region5
    $region4: #{tpu_custom_call.1} parent=1 // pred_region
      %s11 = sadd.s32 0, 0
      %p12 = scmp.lt.s32.totalorder %s11, 0
      %s13 = scalar_select %p12, %s11, 0
      %s14 = smul.u32 7, %s13
      %s16 = ssub.s32 896, 896
      %17 = vsyncadd [#allocation3], %s16
      %s18 = smul.addr %s14, 128
      %s19 = scalar_lea.hbm %s0, %s18
      %s21 = sshll.u32 [#allocation2], 4
      %s22 = int_to_ptr.vmem [resolvable:$true] %s21
      %24 = dma.hbm_to_vmem [thread:$0]  %s19, 896, %s22, [#allocation3]
    $region5: #{tpu_custom_call.1} parent=1 // pred_fallthru
      _
    // Predicated region
    $region6: #{tpu_custom_call.1} parent=1 // pred_check
      _
    $region7: #{tpu_custom_call.1} parent=1 // pred_check_branch
      %26 = sbr.rel (0) target = $region9
    $region8: #{tpu_custom_call.1} parent=1 // pred_region
      %s27 = sadd.s32 0, 0
      %p28 = scmp.lt.s32.totalorder %s27, 0
      %s29 = scalar_select %p28, %s27, 0
      %s30 = smul.u32 7, %s29
      %s32 = ssub.s32 896, 896
      %33 = vsyncadd [#allocation5], %s32
      %s34 = smul.addr %s30, 128
      %s35 = scalar_lea.hbm %s1, %s34
      %s37 = sshll.u32 [#allocation4], 4
      %s38 = int_to_ptr.vmem [resolvable:$true] %s37
      %40 = dma.hbm_to_vmem [thread:$0]  %s35, 896, %s38, [#allocation5]
    $region9: #{tpu_custom_call.1} parent=1 // pred_fallthru
      _
    // Predicated region
    $region10: #{tpu_custom_call.1} parent=1 // pred_check
      _
    $region11: #{tpu_custom_call.1} parent=1 // pred_check_branch
      %42 = sbr.rel (0) target = $region13
    $region12: #{tpu_custom_call.1} parent=1 // pred_region
      %43 = dma.done [#allocation3], 896
    $region13: #{tpu_custom_call.1} parent=1 // pred_fallthru
      _
    // Predicated region
    $region14: #{tpu_custom_call.1} parent=1 // pred_check
      _
    $region15: #{tpu_custom_call.1} parent=1 // pred_check_branch
      %45 = sbr.rel (0) target = $region17
    $region16: #{tpu_custom_call.1} parent=1 // pred_region
      %46 = dma.done [#allocation5], 896
    $region17: #{tpu_custom_call.1} parent=1 // pred_fallthru
      _
    %s47 = sadd.s32 0, 0
    %p48 = scmp.lt.s32.totalorder %s47, 0
    %s49 = scalar_select %p48, %s47, 0
    %s50 = smul.u32 7, %s49
    %s51 = sadd.s32 0, 0
    %p52 = scmp.lt.s32.totalorder %s51, 0
    %s53 = scalar_select %p52, %s51, 0
    %s54 = smul.u32 7, %s53
    %p55 = scmp.eq.s32.totalorder 0, 0
    // Predicated region
    $region18: #{tpu_custom_call.1} parent=1 // pred_check
      %p56 = pneg %p55
    $region19: #{tpu_custom_call.1} parent=1 // pred_check_branch
      %58 = sbr.rel (%p56) target = $region21
    $region20: #{tpu_custom_call.1} parent=1 // pred_region
      %59 = vst [vmem:[%s2] sm:$0x3f] 0.0
      %60 = vst [vmem:[%s2 + $0x8] sm:$0x3f] 0.0
      %61 = vst [vmem:[%s2 + $0x10] sm:$0x3f] 0.0
      %62 = vst [vmem:[%s2 + $0x18] sm:$0x3f] 0.0
      %63 = vst [vmem:[%s2 + $0x20] sm:$0x3f] 0.0
    $region21: #{tpu_custom_call.1} parent=1 // pred_fallthru
      _
    %s64 = sadd.s32 0, 0
    %s65 = smul.u32 %s64, 896
    %s66 = ssub.s32 800, %s65
    %v67 = vlaneseq
    %v68 = vand.u32 %v67, 127
    %v69 = vld [vmem:[#allocation4] sm:$0x3f]
    %v70 = vld [vmem:[#allocation2] sm:$0x3f]
    %v71 = vstv %s66
    %vm72 = vcmp.lt.s32.totalorder %v68, %v71
    %v73 = vsel %vm72, 1, 0
    %vm74 = vcmp.eq.s32.totalorder %v73, 1
    %v75 = vsel %vm74, %v69, 0.0
    %v76 = vsel %vm74, %v70, 0.0
    %v77 = vmul.f32 %v75, %v75
    %v78 = vmul.f32 %v76, %v76
    %v79 = vmul.f32 %v76, %v75
    %v80 = vld [vmem:[#allocation4 + $0x8] sm:$0x3f]
    %v81 = vld [vmem:[#allocation2 + $0x8] sm:$0x3f]
    %s82 = ssub.s32 672, %s65
    %v83 = vstv %s82
    %vm84 = vcmp.lt.s32.totalorder %v68, %v83
    %v85 = vsel %vm84, 1, 0
    %vm86 = vcmp.eq.s32.totalorder %v85, 1
    %v87 = vsel %vm86, %v80, 0.0
    %v88 = vsel %vm86, %v81, 0.0
    %v89 = vadd.f32 %v75, %v87
    %v90 = vadd.f32 %v76, %v88
    %v91 = vmul.f32 %v87, %v87
    %v92 = vadd.f32 %v77, %v91
    %v93 = vmul.f32 %v88, %v88
    %v94 = vadd.f32 %v78, %v93
    %v95 = vmul.f32 %v88, %v87
    %v96 = vadd.f32 %v79, %v95
    %v97 = vld [vmem:[#allocation4 + $0x10] sm:$0x3f]
    %v98 = vld [vmem:[#allocation2 + $0x10] sm:$0x3f]
    %s99 = ssub.s32 544, %s65
    %v100 = vstv %s99
    %vm101 = vcmp.lt.s32.totalorder %v68, %v100
    %v102 = vsel %vm101, 1, 0
    %vm103 = vcmp.eq.s32.totalorder %v102, 1
    %v104 = vsel %vm103, %v97, 0.0
    %v105 = vsel %vm103, %v98, 0.0
    %v106 = vadd.f32 %v89, %v104
    %v107 = vadd.f32 %v90, %v105
    %v108 = vmul.f32 %v104, %v104
    %v109 = vadd.f32 %v92, %v108
    %v110 = vmul.f32 %v105, %v105
    %v111 = vadd.f32 %v94, %v110
    %v112 = vmul.f32 %v105, %v104
    %v113 = vadd.f32 %v96, %v112
    %v114 = vld [vmem:[#allocation4 + $0x18] sm:$0x3f]
    %v115 = vld [vmem:[#allocation2 + $0x18] sm:$0x3f]
    %s116 = ssub.s32 416, %s65
    %v117 = vstv %s116
    %vm118 = vcmp.lt.s32.totalorder %v68, %v117
    %v119 = vsel %vm118, 1, 0
    %vm120 = vcmp.eq.s32.totalorder %v119, 1
    %v121 = vsel %vm120, %v114, 0.0
    %v122 = vsel %vm120, %v115, 0.0
    %v123 = vadd.f32 %v106, %v121
    %v124 = vadd.f32 %v107, %v122
    %v125 = vmul.f32 %v121, %v121
    %v126 = vadd.f32 %v109, %v125
    %v127 = vmul.f32 %v122, %v122
    %v128 = vadd.f32 %v111, %v127
    %v129 = vmul.f32 %v122, %v121
    %v130 = vadd.f32 %v113, %v129
    %v131 = vld [vmem:[#allocation4 + $0x20] sm:$0x3f]
    %v132 = vld [vmem:[#allocation2 + $0x20] sm:$0x3f]
    %s133 = ssub.s32 288, %s65
    %v134 = vstv %s133
    %vm135 = vcmp.lt.s32.totalorder %v68, %v134
    %v136 = vsel %vm135, 1, 0
    %vm137 = vcmp.eq.s32.totalorder %v136, 1
    %v138 = vsel %vm137, %v131, 0.0
    %v139 = vsel %vm137, %v132, 0.0
    %v140 = vadd.f32 %v123, %v138
    %v141 = vadd.f32 %v124, %v139
    %v142 = vmul.f32 %v138, %v138
    %v143 = vadd.f32 %v126, %v142
    %v144 = vmul.f32 %v139, %v139
    %v145 = vadd.f32 %v128, %v144
    %v146 = vmul.f32 %v139, %v138
    %v147 = vadd.f32 %v130, %v146
    %v148 = vld [vmem:[#allocation4 + $0x28] sm:$0x3f]
    %v149 = vld [vmem:[#allocation2 + $0x28] sm:$0x3f]
    %s150 = ssub.s32 160, %s65
    %v151 = vstv %s150
    %vm152 = vcmp.lt.s32.totalorder %v68, %v151
    %v153 = vsel %vm152, 1, 0
    %vm154 = vcmp.eq.s32.totalorder %v153, 1
    %v155 = vsel %vm154, %v148, 0.0
    %v156 = vsel %vm154, %v149, 0.0
    %v157 = vadd.f32 %v140, %v155
    %v158 = vadd.f32 %v141, %v156
    %v159 = vmul.f32 %v155, %v155
    %v160 = vadd.f32 %v143, %v159
    %v161 = vmul.f32 %v156, %v156
    %v162 = vadd.f32 %v145, %v161
    %v163 = vmul.f32 %v156, %v155
    %v164 = vadd.f32 %v147, %v163
    %v165 = vld [vmem:[#allocation4 + $0x30] sm:$0x3f]
    %v166 = vld [vmem:[#allocation2 + $0x30] sm:$0x3f]
    %s167 = ssub.s32 32, %s65
    %v168 = vstv %s167
    %vm169 = vcmp.lt.s32.totalorder %v68, %v168
    %v170 = vsel %vm169, 1, 0
    %vm171 = vcmp.eq.s32.totalorder %v170, 1
    %v172 = vsel %vm171, %v165, 0.0
    %v173 = vsel %vm171, %v166, 0.0
    %v174 = vadd.f32 %v157, %v172
    %v175 = vadd.f32 %v158, %v173
    %v176 = vmul.f32 %v172, %v172
    %v177 = vadd.f32 %v160, %v176
    %v178 = vmul.f32 %v173, %v173
    %v179 = vadd.f32 %v162, %v178
    %v180 = vmul.f32 %v173, %v172
    %v181 = vadd.f32 %v164, %v180
    %v182 = vld [vmem:[%s2] sm:$0x3f]
    %v183 = vadd.f32 %v182, %v174
    %184 = vst [vmem:[%s2] sm:$0x3f] %v183
    %v185 = vld [vmem:[%s2 + $0x8] sm:$0x3f]
    %v186 = vadd.f32 %v185, %v175
    %187 = vst [vmem:[%s2 + $0x8] sm:$0x3f] %v186
    %v188 = vld [vmem:[%s2 + $0x10] sm:$0x3f]
    %v189 = vadd.f32 %v188, %v177
    %190 = vst [vmem:[%s2 + $0x10] sm:$0x3f] %v189
    %v191 = vld [vmem:[%s2 + $0x18] sm:$0x3f]
    %v192 = vadd.f32 %v191, %v179
    %193 = vst [vmem:[%s2 + $0x18] sm:$0x3f] %v192
    %v194 = vld [vmem:[%s2 + $0x20] sm:$0x3f]
    %v195 = vadd.f32 %v194, %v181
    %196 = vst [vmem:[%s2 + $0x20] sm:$0x3f] %v195
    // Predicated region
    $region22: #{tpu_custom_call.1} parent=1 // pred_check
      _
    $region23: #{tpu_custom_call.1} parent=1 // pred_check_branch
      %198 = sbr.rel (0) target = $region25
    $region24: #{tpu_custom_call.1} parent=1 // pred_region
      _
    $region25: #{tpu_custom_call.1} parent=1 // pred_fallthru
      _
    // Predicated region
    $region26: #{tpu_custom_call.1} parent=1 // pred_check
      _
    $region27: #{tpu_custom_call.1} parent=1 // pred_check_branch
      %200 = sbr.rel (0) target = $region29
    $region28: #{tpu_custom_call.1} parent=1 // pred_region
      _
    $region29: #{tpu_custom_call.1} parent=1 // pred_fallthru
      _
    %201 = vsyncpa [#allocation3], 1
    %202 = vsyncpa [#allocation5], 1

</llo_original>
